<compile_context>
chip_gen: v6e
topology: v6e:2x2x1
jax: 0.10.0
libtpu: 0.0.40
codegen_flags: <defaults>
</compile_context>

<pallas_src>
import jax
import jax.numpy as jnp
from jax.experimental import pallas as pl
from jax.experimental.pallas import tpu as pltpu


def _forget_gate_kernel(x_ref, h_ref, wx_ref, wh_ref, b_ref, o_ref):
    """One (tm, tn) output tile: fused x@Wx + h@Wh + b with sigmoid epilogue."""
    # In-kernel cast of activations to the MXU compute dtype (cheap VPU cast,
    # avoids a wrapper-side HBM pass over the activations).
    xb = x_ref[...].astype(wx_ref.dtype)
    hb = h_ref[...].astype(wh_ref.dtype)
    z = jnp.dot(xb, wx_ref[...], preferred_element_type=jnp.float32)
    z = z + jnp.dot(hb, wh_ref[...], preferred_element_type=jnp.float32)
    z = z + b_ref[...]                      # f32 epilogue; biases pre-folded
    o_ref[...] = jax.nn.sigmoid(z).astype(o_ref.dtype)


def prepare_forget_gate_params(w_if, b_if, w_hf, b_hf, b_f,
                               compute_dtype=jnp.bfloat16):
    """One-time parameter prep (outside the per-call path):
       - transpose PyTorch-layout (out, in) weights to (in, out),
       - cast them to the MXU compute dtype (bf16),
       - fold the three biases into a single f32 row."""
    hidden = w_if.shape[0]
    w_x = jnp.asarray(w_if).T.astype(compute_dtype)       # (input_size, hidden)
    w_h = jnp.asarray(w_hf).T.astype(compute_dtype)       # (hidden, hidden)
    b = (b_if.astype(jnp.float32) + b_hf.astype(jnp.float32)
         + b_f.astype(jnp.float32)).reshape(1, hidden)
    return w_x, w_h, b


def _pick_tn(H):
    """N (lane) tile: a multiple of 128 when H allows, else one full-dim block."""
    if H % 128 == 0:
        for cand in (512, 256, 128):
            if H % cand == 0:
                return cand
    return H  # full-dim block is always legal (no padding, no post-slice)


def _pick_tm(B, n_tiles):
    """M (sublane) tile: largest 8-aligned divisor of B (<=256), else full B."""
    tm = B  # full-dim single block is always legal
    for cand in range(min(256, B), 7, -1):
        if B % cand == 0 and cand % 8 == 0:
            tm = cand
            break
    # v7x megacore: make sure a 'parallel' axis gets >= 2 blocks when possible.
    if n_tiles == 1 and B // tm == 1 and B >= 16:
        for cand in range(min(256, B - 1), 7, -1):
            if B % cand == 0 and cand % 8 == 0:
                tm = cand
                break
    return tm


def _itemsize(dt):
    return jnp.dtype(dt).itemsize


@jax.jit
def forget_gate(x, h, w_x, w_h, b):
    """x: (B, input_size), h: (B, hidden_size),
       w_x: (input_size, hidden) bf16, w_h: (hidden, hidden) bf16,
       b: (1, hidden) f32  (b_if + b_hf + b_f folded)."""
    B, Kx = x.shape
    Kh, H = w_h.shape
    out_dtype = x.dtype

    tn = _pick_tn(H)
    n_tiles = H // tn
    tm = _pick_tm(B, n_tiles)

    def vmem_estimate(tm_, tn_):
        # Double-buffered tiles under BlockSpec auto-pipelining.
        return 2 * (tm_ * Kx * _itemsize(x.dtype)
                    + tm_ * Kh * _itemsize(h.dtype)
                    + Kx * tn_ * _itemsize(w_x.dtype)
                    + Kh * tn_ * _itemsize(w_h.dtype)
                    + tn_ * _itemsize(b.dtype)
                    + tm_ * tn_ * _itemsize(out_dtype))

    # K is deliberately untiled (realistic LSTM K fits VMEM comfortably and
    # untiling removes all accumulator machinery); shrink the M tile if the
    # working set would overflow the v7x budget.
    # TODO(synk): reintroduce a K grid axis + f32 accumulator for K >> 8192.
    while (vmem_estimate(tm, tn) > (36 << 20) and tm >= 16
           and B % (tm // 2) == 0 and (tm // 2) % 8 == 0):
        tm //= 2

    m_tiles = B // tm
    est = vmem_estimate(tm, tn)
    vmem_limit = int(min(max(est + (4 << 20), 32 << 20), 60 << 20))

    grid = (n_tiles, m_tiles)   # N outer, M inner -> weights stay VMEM-resident

    return pl.pallas_call(
        _forget_gate_kernel,
        out_shape=jax.ShapeDtypeStruct((B, H), out_dtype),
        grid_spec=pltpu.PrefetchScalarGridSpec(
            num_scalar_prefetch=0,
            grid=grid,
            in_specs=[
                pl.BlockSpec((tm, Kx), lambda j, i: (i, 0)),   # x rows
                pl.BlockSpec((tm, Kh), lambda j, i: (i, 0)),   # h rows
                pl.BlockSpec((Kx, tn), lambda j, i: (0, j)),   # W_if^T slab
                pl.BlockSpec((Kh, tn), lambda j, i: (0, j)),   # W_hf^T slab
                pl.BlockSpec((1, tn), lambda j, i: (0, j)),    # folded bias row
            ],
            out_specs=pl.BlockSpec((tm, tn), lambda j, i: (i, j)),
        ),
        compiler_params=pltpu.CompilerParams(
            dimension_semantics=("parallel", "parallel"),
            vmem_limit_bytes=vmem_limit),
    )(x, h, w_x, w_h, b)


if __name__ == "__main__":
    # Small shapes consistent with the module: Linear(input_size, hidden_size).
    B, input_size, hidden_size = 8, 16, 32

    key = jax.random.PRNGKey(0)
    kx, kh, kw1, kb1, kw2, kb2 = jax.random.split(key, 6)

    x = jax.random.normal(kx, (B, input_size), dtype=jnp.float32)
    h = jax.random.normal(kh, (B, hidden_size), dtype=jnp.float32)

    # Deterministic parameters (PyTorch Linear layout: weight (out, in)).
    w_if = jax.random.normal(kw1, (hidden_size, input_size), jnp.float32) * 0.1
    b_if = jax.random.normal(kb1, (hidden_size,), jnp.float32) * 0.1
    w_hf = jax.random.normal(kw2, (hidden_size, hidden_size), jnp.float32) * 0.1
    b_hf = jax.random.normal(kb2, (hidden_size,), jnp.float32) * 0.1
    b_f = jnp.zeros((hidden_size,), dtype=jnp.float32)   # nn.Parameter(zeros)

    # One-time prep (transpose / bias fold / bf16 cast).
    w_x, w_h, b_total = prepare_forget_gate_params(w_if, b_if, w_hf, b_hf, b_f)

    out = forget_gate(x, h, w_x, w_h, b_total)
    out = jax.block_until_ready(out)
    assert out.shape == (B, hidden_size)

    # Precision-matched reference (same bf16 operands, f32 accumulate).
    ref_bf16 = jax.nn.sigmoid(
        jnp.dot(x.astype(jnp.bfloat16), w_x, preferred_element_type=jnp.float32)
        + jnp.dot(h.astype(jnp.bfloat16), w_h, preferred_element_type=jnp.float32)
        + b_total)
    assert jnp.allclose(out, ref_bf16, atol=2e-5, rtol=2e-5), \
        float(jnp.max(jnp.abs(out - ref_bf16)))

    # Full-f32 PyTorch-semantics reference (loose tolerance: bf16 matmul inputs).
    ref_f32 = jax.nn.sigmoid(x @ w_if.T + b_if + h @ w_hf.T + b_hf + b_f)
    assert jnp.allclose(out, ref_f32, atol=3e-2, rtol=3e-2), \
        float(jnp.max(jnp.abs(out - ref_f32)))

    print("KERNEL_OK")
</pallas_src>

<mosaic_0001>
module attributes {stable_mosaic.version = 11 : i64} {
  func.func @_forget_gate_kernel(%arg0: i32, %arg1: i32, %arg2: memref<8x16xf32, #tpu.memory_space<vmem>>, %arg3: memref<8x32xf32, #tpu.memory_space<vmem>>, %arg4: memref<16x32xbf16, #tpu.memory_space<vmem>>, %arg5: memref<32x32xbf16, #tpu.memory_space<vmem>>, %arg6: memref<1x32xf32, #tpu.memory_space<vmem>>, %arg7: memref<8x32xf32, #tpu.memory_space<vmem>>) attributes {dimension_semantics = [#tpu.dimension_semantics<parallel>, #tpu.dimension_semantics<parallel>], iteration_bounds = array<i64: 1, 1>, scalar_prefetch = 0 : i64, scratch_operands = 0 : i64, tpu.core_type = #tpu.core_type<tc>, window_params = [{transform_indices = @transform_0, window_bounds = array<i64: 8, 16>}, {transform_indices = @transform_1, window_bounds = array<i64: 8, 32>}, {transform_indices = @transform_2, window_bounds = array<i64: 16, 32>}, {transform_indices = @transform_3, window_bounds = array<i64: 32, 32>}, {transform_indices = @transform_4, window_bounds = array<i64: 1, 32>}, {transform_indices = @transform_5, window_bounds = array<i64: 8, 32>}]} {
    %c0 = arith.constant 0 : index
    %c0_0 = arith.constant 0 : index
    %0 = vector.load %arg2[%c0, %c0_0] : memref<8x16xf32, #tpu.memory_space<vmem>>, vector<8x16xf32>
    %1 = arith.truncf %0 : vector<8x16xf32> to vector<8x16xbf16>
    %c0_1 = arith.constant 0 : index
    %c0_2 = arith.constant 0 : index
    %2 = vector.load %arg3[%c0_1, %c0_2] : memref<8x32xf32, #tpu.memory_space<vmem>>, vector<8x32xf32>
    %3 = arith.truncf %2 : vector<8x32xf32> to vector<8x32xbf16>
    %c0_3 = arith.constant 0 : index
    %c0_4 = arith.constant 0 : index
    %4 = vector.load %arg4[%c0_3, %c0_4] : memref<16x32xbf16, #tpu.memory_space<vmem>>, vector<16x32xbf16>
    %cst = arith.constant dense<0.000000e+00> : vector<8x32xf32>
    %5 = tpu.matmul %1, %4, %cst {dimension_numbers = #tpu.dot_dimension_numbers<[1], [0], [0], [1], [0, 0, 1, 1], [], []>} : vector<8x16xbf16>, vector<16x32xbf16>, vector<8x32xf32> -> vector<8x32xf32>
    %c0_5 = arith.constant 0 : index
    %c0_6 = arith.constant 0 : index
    %6 = vector.load %arg5[%c0_5, %c0_6] : memref<32x32xbf16, #tpu.memory_space<vmem>>, vector<32x32xbf16>
    %cst_7 = arith.constant dense<0.000000e+00> : vector<8x32xf32>
    %7 = tpu.matmul %3, %6, %cst_7 {dimension_numbers = #tpu.dot_dimension_numbers<[1], [0], [0], [1], [0, 0, 1, 1], [], []>} : vector<8x32xbf16>, vector<32x32xbf16>, vector<8x32xf32> -> vector<8x32xf32>
    %8 = arith.addf %5, %7 : vector<8x32xf32>
    %c0_8 = arith.constant 0 : index
    %c0_9 = arith.constant 0 : index
    %9 = vector.load %arg6[%c0_8, %c0_9] : memref<1x32xf32, #tpu.memory_space<vmem>>, vector<1x32xf32>
    %10 = vector.broadcast %9 : vector<1x32xf32> to vector<8x32xf32>
    %11 = arith.addf %8, %10 : vector<8x32xf32>
    %12 = arith.negf %11 : vector<8x32xf32>
    %13 = math.exp %12 : vector<8x32xf32>
    %cst_10 = arith.constant 1.000000e+00 : f32
    %14 = vector.broadcast %cst_10 : f32 to vector<8x32xf32>
    %15 = arith.addf %14, %13 : vector<8x32xf32>
    %16 = arith.divf %14, %15 : vector<8x32xf32>
    %c0_11 = arith.constant 0 : index
    %c0_12 = arith.constant 0 : index
    %17 = vector.load %arg7[%c0_11, %c0_12] : memref<8x32xf32, #tpu.memory_space<vmem>>, vector<8x32xf32>
    tpu.vector_store %arg7[%c0_11, %c0_12], %16 {strides = array<i32>} : memref<8x32xf32, #tpu.memory_space<vmem>>, vector<8x32xf32>,
    return
  }
  func.func @transform_0(%arg0: i32, %arg1: i32) -> (i32, i32) {
    %c0_i32 = arith.constant 0 : i32
    %c0_i32_0 = arith.constant 0 : i32
    return %arg1, %c0_i32 : i32, i32
  }
  func.func @transform_1(%arg0: i32, %arg1: i32) -> (i32, i32) {
    %c0_i32 = arith.constant 0 : i32
    %c0_i32_0 = arith.constant 0 : i32
    return %arg1, %c0_i32 : i32, i32
  }
  func.func @transform_2(%arg0: i32, %arg1: i32) -> (i32, i32) {
    %c0_i32 = arith.constant 0 : i32
    %c0_i32_0 = arith.constant 0 : i32
    return %c0_i32, %arg0 : i32, i32
  }
  func.func @transform_3(%arg0: i32, %arg1: i32) -> (i32, i32) {
    %c0_i32 = arith.constant 0 : i32
    %c0_i32_0 = arith.constant 0 : i32
    return %c0_i32, %arg0 : i32, i32
  }
  func.func @transform_4(%arg0: i32, %arg1: i32) -> (i32, i32) {
    %c0_i32 = arith.constant 0 : i32
    %c0_i32_0 = arith.constant 0 : i32
    return %c0_i32, %arg0 : i32, i32
  }
  func.func @transform_5(%arg0: i32, %arg1: i32) -> (i32, i32) {
    %c0_i32 = arith.constant 0 : i32
    return %arg1, %arg0 : i32, i32
  }
}

</mosaic_0001>

<llo_original>
// kernel: forget_gate.1
$region0: #{forget_gate.1}
  #allocation0 [shape = 'u32[]', space=smem, size = 0x4, offset = 0x4, fixed_abs, tag = 'smem constant byte address 0x4 - core index']
  #allocation1 [shape = 'u32[144,128]{1,0:T(1,128)}', space=vmem, size = 0x12000, scoped, tag = 'internal scratch']
  %s0 = inlined_call_operand.hbm [shape: f32[8,16], index: 0, kind: input, shape index: {}]
  %s1 = inlined_call_operand.hbm [shape: f32[8,32], index: 1, kind: input, shape index: {}]
  %s2 = inlined_call_operand.hbm [shape: bf16[16,32], index: 2, kind: input, shape index: {}]
  %s3 = inlined_call_operand.hbm [shape: bf16[32,32], index: 3, kind: input, shape index: {}]
  %s4 = inlined_call_operand.vmem [shape: f32[1,32], index: 4, kind: input, shape index: {}]
  %s5 = inlined_call_operand.hbm [shape: f32[8,32], index: 5, kind: output, shape index: {}]
  %s6 = sld [smem:[#allocation0]]
  $region46: #{forget_gate.1} parent=0
    _
  %s8 = ssub.s32 1, %s6
  %s9 = scalar_select 0, %s8, %s6
  $region1: #{forget_gate.1} parent=0
    #allocation2 [shape = 'u8[4096]{0}', space=vmem, size = 0x1000, scoped, tag = 'input window, operand 0, single buffered']
    #allocation3 [shape = 's32[1]{0}', space=sflag, size = 0x4, scoped, tag = 'scoped memory for forget_gate.1']
    #allocation4 [shape = 's32[1]{0}', space=sflag, size = 0x4, scoped, tag = 'scoped memory for forget_gate.1']
    #allocation5 [shape = 'u8[4096]{0}', space=vmem, size = 0x1000, scoped, tag = 'input window, operand 1, single buffered']
    #allocation6 [shape = 's32[1]{0}', space=sflag, size = 0x4, scoped, tag = 'scoped memory for forget_gate.1']
    #allocation7 [shape = 'u8[4096]{0}', space=vmem, size = 0x1000, scoped, tag = 'input window, operand 2, single buffered']
    #allocation8 [shape = 'u8[8192]{0}', space=vmem, size = 0x2000, scoped, tag = 'input window, operand 3, single buffered']
    #allocation9 [shape = 's32[1]{0}', space=sflag, size = 0x4, scoped, tag = 'scoped memory for forget_gate.1']
    #allocation10 [shape = 'u8[4096]{0}', space=vmem, size = 0x1000, scoped, tag = 'output window, operand 0, single buffered']
    %10 = vsyncpa [#allocation3], 0
    %11 = vsyncpa [#allocation6], 0
    %12 = vsyncpa [#allocation9], 0
    %13 = vsyncpa [#allocation4], 0
    // Predicated region
    $region2: #{forget_gate.1} parent=1 // pred_check
      _
    $region3: #{forget_gate.1} parent=1 // pred_check_branch
      %15 = sbr.rel (0) target = $region5
    $region4: #{forget_gate.1} parent=1 // pred_region
      %s17 = ssub.s32 128, 128
      %18 = vsyncadd [#allocation3], %s17
      %s20 = sshll.u32 [#allocation2], 4
      %s21 = int_to_ptr.vmem [resolvable:$true] %s20
      %23 = dma.hbm_to_vmem [thread:$0]  %s0, 128, %s21, [#allocation3]
    $region5: #{forget_gate.1} parent=1 // pred_fallthru
      _
    // Predicated region
    $region6: #{forget_gate.1} parent=1 // pred_check
      _
    $region7: #{forget_gate.1} parent=1 // pred_check_branch
      %25 = sbr.rel (0) target = $region9
    $region8: #{forget_gate.1} parent=1 // pred_region
      %s27 = ssub.s32 128, 128
      %28 = vsyncadd [#allocation6], %s27
      %s30 = sshll.u32 [#allocation5], 4
      %s31 = int_to_ptr.vmem [resolvable:$true] %s30
      %33 = dma.hbm_to_vmem [thread:$0]  %s1, 128, %s31, [#allocation6]
    $region9: #{forget_gate.1} parent=1 // pred_fallthru
      _
    // Predicated region
    $region10: #{forget_gate.1} parent=1 // pred_check
      _
    $region11: #{forget_gate.1} parent=1 // pred_check_branch
      %35 = sbr.rel (0) target = $region13
    $region12: #{forget_gate.1} parent=1 // pred_region
      %s37 = ssub.s32 128, 128
      %38 = vsyncadd [#allocation6], %s37
      %s39 = sshll.u32 [#allocation7], 4
      %s40 = int_to_ptr.vmem [resolvable:$true] %s39
      %45 = dma.hbm_to_vmem [thread:$0]  %s2, 128, %s40, [#allocation6], 64, 64, 4
    $region13: #{forget_gate.1} parent=1 // pred_fallthru
      _
    // Predicated region
    $region14: #{forget_gate.1} parent=1 // pred_check
      _
    $region15: #{forget_gate.1} parent=1 // pred_check_branch
      %47 = sbr.rel (0) target = $region17
    $region16: #{forget_gate.1} parent=1 // pred_region
      %s49 = ssub.s32 256, 256
      %50 = vsyncadd [#allocation9], %s49
      %s51 = sshll.u32 [#allocation8], 4
      %s52 = int_to_ptr.vmem [resolvable:$true] %s51
      %57 = dma.hbm_to_vmem [thread:$0]  %s3, 256, %s52, [#allocation9], 64, 64, 4
    $region17: #{forget_gate.1} parent=1 // pred_fallthru
      _
    // Predicated region
    $region18: #{forget_gate.1} parent=1 // pred_check
      _
    $region19: #{forget_gate.1} parent=1 // pred_check_branch
      %59 = sbr.rel (0) target = $region21
    $region20: #{forget_gate.1} parent=1 // pred_region
      _
    $region21: #{forget_gate.1} parent=1 // pred_fallthru
      _
    // Predicated region
    $region22: #{forget_gate.1} parent=1 // pred_check
      _
    $region23: #{forget_gate.1} parent=1 // pred_check_branch
      %61 = sbr.rel (0) target = $region25
    $region24: #{forget_gate.1} parent=1 // pred_region
      %62 = dma.done [#allocation3], 128
    $region25: #{forget_gate.1} parent=1 // pred_fallthru
      _
    // Predicated region
    $region26: #{forget_gate.1} parent=1 // pred_check
      _
    $region27: #{forget_gate.1} parent=1 // pred_check_branch
      %64 = sbr.rel (0) target = $region29
    $region28: #{forget_gate.1} parent=1 // pred_region
      %65 = dma.done [#allocation6], 128
    $region29: #{forget_gate.1} parent=1 // pred_fallthru
      _
    // Predicated region
    $region30: #{forget_gate.1} parent=1 // pred_check
      _
    $region31: #{forget_gate.1} parent=1 // pred_check_branch
      %67 = sbr.rel (0) target = $region33
    $region32: #{forget_gate.1} parent=1 // pred_region
      %68 = dma.done [#allocation6], 128
    $region33: #{forget_gate.1} parent=1 // pred_fallthru
      _
    // Predicated region
    $region34: #{forget_gate.1} parent=1 // pred_check
      _
    $region35: #{forget_gate.1} parent=1 // pred_check_branch
      %70 = sbr.rel (0) target = $region37
    $region36: #{forget_gate.1} parent=1 // pred_region
      %71 = dma.done [#allocation9], 256
    $region37: #{forget_gate.1} parent=1 // pred_fallthru
      _
    %v73 = vld [vmem:[#allocation2] sm:$0xff]
    %v74 = vpack.c.bf16 %v73, %v73
    %v75 = vld [vmem:[#allocation5] sm:$0xff]
    %v76 = vpack.c.bf16 %v75, %v75
    %v77 = vld [vmem:[#allocation7] sm:$0xf]
    %v78 = vld [vmem:[#allocation7 + $0x4] sm:$0xf]
    %v79 = vld [vmem:[#allocation8] sm:$0xf]
    %v80 = vld [vmem:[#allocation8 + $0x4] sm:$0xf]
    %v81 = vld [vmem:[#allocation8 + $0x8] sm:$0xf]
    %v82 = vld [vmem:[#allocation8 + $0xc] sm:$0xf]
    %v87 = vunpack.c.l.b16 %v79
    %v88 = vunpack.c.l.b16 %v80
    %v89 = vunpack.c.l.b16 %v81
    %v90 = vunpack.c.l.b16 %v82
    %v91 = vpack.c.b16 %v88, %v87
    %v92 = vpack.c.b16 %v90, %v89
    %vm95 = vcmask 261120
    %v97 = vsel %vm95, %v76, 0
    %99 = vmatprep.subr.bf16.mxu0 0
    %100 = vmatpush1.bf16.msra.mxu0 0
    %101 = vmatprep.subr.bf16.mxu0 0
    %102 = vmatpush1.bf16.msra.mxu0 0
    %103 = vmatprep.subr.bf16.mxu0 0
    %104 = vmatpush1.bf16.msra.mxu0 0
    %105 = vmatprep.subr.bf16.mxu0 0
    %106 = vmatpush1.bf16.msra.mxu0 0
    %107 = vmatprep.subr.bf16.mxu0 0
    %108 = vmatpush1.bf16.msra.mxu0 0
    %109 = vmatprep.subr.bf16.mxu0 0
    %110 = vmatpush1.bf16.msra.mxu0 0
    %111 = vmatprep.subr.bf16.mxu0 0
    %112 = vmatpush1.bf16.msra.mxu0 %v92
    %113 = vmatprep.subr.bf16.mxu0 0
    %114 = vmatpush1.bf16.msra.mxu0 %v91
    %115 = vmatprep.subr.bf16.mxu0 0
    %116 = vmatpush2.bf16.msra.mxu0 0
    %117 = vmatprep.subr.bf16.mxu0 0
    %118 = vmatpush2.bf16.msra.mxu0 0
    %119 = vmatprep.subr.bf16.mxu0 0
    %120 = vmatpush2.bf16.msra.mxu0 0
    %121 = vmatprep.subr.bf16.mxu0 0
    %122 = vmatpush2.bf16.msra.mxu0 0
    %123 = vmatprep.subr.bf16.mxu0 0
    %124 = vmatpush2.bf16.msra.mxu0 0
    %125 = vmatprep.subr.bf16.mxu0 0
    %126 = vmatpush2.bf16.msra.mxu0 0
    %127 = vmatprep.subr.bf16.mxu0 0
    %128 = vmatpush2.bf16.msra.mxu0 0
    %129 = vmatprep.subr.bf16.mxu0 0
    %130 = vmatpush2.bf16.msra.mxu0 0
    %131 = vmatprep.mubr.bf16.mxu0 0
    %132 = vmatmul.mubr.bf16.gmra.mxu0 %v97
    %v133 = vpop.f32.mrf.mxu0
    %v134 = vadd.f32 0.0, %v133
    %v135 = vpop.f32.mrf.mxu0
    %v136 = vpop.f32.mrf.mxu0
    %v137 = vpop.f32.mrf.mxu0
    %138 = vdwg.mxu0
    %v141 = vunpack.c.l.b16 %v77
    %v142 = vunpack.c.l.b16 %v78
    %v143 = vpack.c.b16 %v142, %v141
    %vm145 = vcmask 130048
    %v147 = vsel %vm145, %v74, 0
    %149 = vmatprep.subr.bf16.mxu0 0
    %150 = vmatpush1.bf16.msra.mxu0 0
    %151 = vmatprep.subr.bf16.mxu0 0
    %152 = vmatpush1.bf16.msra.mxu0 0
    %153 = vmatprep.subr.bf16.mxu0 0
    %154 = vmatpush1.bf16.msra.mxu0 0
    %155 = vmatprep.subr.bf16.mxu0 0
    %156 = vmatpush1.bf16.msra.mxu0 0
    %157 = vmatprep.subr.bf16.mxu0 0
    %158 = vmatpush1.bf16.msra.mxu0 0
    %159 = vmatprep.subr.bf16.mxu0 0
    %160 = vmatpush1.bf16.msra.mxu0 0
    %161 = vmatprep.subr.bf16.mxu0 0
    %162 = vmatpush1.bf16.msra.mxu0 0
    %163 = vmatprep.subr.bf16.mxu0 0
    %164 = vmatpush1.bf16.msra.mxu0 %v143
    %165 = vmatprep.subr.bf16.mxu0 0
    %166 = vmatpush2.bf16.msra.mxu0 0
    %167 = vmatprep.subr.bf16.mxu0 0
    %168 = vmatpush2.bf16.msra.mxu0 0
    %169 = vmatprep.subr.bf16.mxu0 0
    %170 = vmatpush2.bf16.msra.mxu0 0
    %171 = vmatprep.subr.bf16.mxu0 0
    %172 = vmatpush2.bf16.msra.mxu0 0
    %173 = vmatprep.subr.bf16.mxu0 0
    %174 = vmatpush2.bf16.msra.mxu0 0
    %175 = vmatprep.subr.bf16.mxu0 0
    %176 = vmatpush2.bf16.msra.mxu0 0
    %177 = vmatprep.subr.bf16.mxu0 0
    %178 = vmatpush2.bf16.msra.mxu0 0
    %179 = vmatprep.subr.bf16.mxu0 0
    %180 = vmatpush2.bf16.msra.mxu0 0
    %181 = vmatprep.mubr.bf16.mxu0 0
    %182 = vmatmul.mubr.bf16.gmra.mxu0 %v147
    %v183 = vpop.f32.mrf.mxu0
    %v184 = vadd.f32 %v134, %v183
    %v185 = vpop.f32.mrf.mxu0
    %v186 = vpop.f32.mrf.mxu0
    %v187 = vpop.f32.mrf.mxu0
    %188 = vdwg.mxu0
    %v189 = vld [vmem:[%s4] sm:$0x1]
    %v191 = vlaneseq
    %v192 = vshrl.u32 %v191, 7
    %v193 = vsub.s32 0, %v192
    %v194 = vrot.slane %v189, %v193
    %v196 = vadd.f32 %v184, %v194
    %v197 = vxor.u32 %v196, 2147483648
    %v198 = vmul.f32 %v197, 1.442695
    %v199 = vpow.pop %v198
    %v200 = vadd.f32 %v199, 1.0
    %v201 = vrcp.pop %v200
    %v202 = vmul.f32 1.0, %v201
    %203 = vst.msk [vmem:[#allocation10] sm:$0xff] %vm95, %v202
    // Predicated region
    $region38: #{forget_gate.1} parent=1 // pred_check
      _
    $region39: #{forget_gate.1} parent=1 // pred_check_branch
      %205 = sbr.rel (0) target = $region41
    $region40: #{forget_gate.1} parent=1 // pred_region
      %s207 = ssub.s32 128, 128
      %208 = vsyncadd [#allocation4], %s207
      %s210 = sshll.u32 [#allocation10], 4
      %s211 = int_to_ptr.vmem [resolvable:$true] %s210
      %213 = dma.vmem_to_hbm [thread:$0]  %s211, 128, %s5, [#allocation4]
    $region41: #{forget_gate.1} parent=1 // pred_fallthru
      _
    // Predicated region
    $region42: #{forget_gate.1} parent=1 // pred_check
      _
    $region43: #{forget_gate.1} parent=1 // pred_check_branch
      %215 = sbr.rel (0) target = $region45
    $region44: #{forget_gate.1} parent=1 // pred_region
      %216 = dma.done [#allocation4], 128
    $region45: #{forget_gate.1} parent=1 // pred_fallthru
      _
    %217 = vsyncpa [#allocation3], 1
    %218 = vsyncpa [#allocation6], 1
    %219 = vsyncpa [#allocation9], 1
    %220 = vsyncpa [#allocation4], 1

</llo_original>
